<compile_context>
chip_gen: v7x
topology: tpu7x:2x2x1
jax: 0.10.0
libtpu: 0.0.40
codegen_flags: <defaults>
</compile_context>

<pallas_src>
import math

import jax
import jax.numpy as jnp
from jax.experimental import pallas as pl
from jax.experimental.pallas import tpu as pltpu


def _round_up(x: int, m: int) -> int:
    return ((x + m - 1) // m) * m


def _per_gen_budget():
    """Return (streamed-x tile target bytes, vmem_limit_bytes) per chip gen."""
    try:
        cap = int(pltpu.get_tpu_info().vmem_capacity_bytes)
    except Exception:
        cap = 64 * 1024 * 1024  # conservative default (v7x: 64 MiB per TC)
    if cap >= 128 * 1024 * 1024:               # v5e / v6e (128 MiB VMEM)
        return 4 * 1024 * 1024, 64 * 1024 * 1024
    return 2 * 1024 * 1024, 32 * 1024 * 1024   # v7x (64 MiB per TC)


def _aggregator_kernel(x_ref, w_ref, b_ref, o_ref):
    # x_ref: (bn*K, D)  block of collapsed neighbor features (unpadded last dim)
    # w_ref: (D, Dp)    weight, output cols padded; VMEM-resident (const index_map)
    # b_ref: (1, Dp)    bias, padded; VMEM-resident
    # o_ref: (bn, Dp)   output block (lane-dense, Dp % 128 == 0)
    bn, Dp = o_ref.shape
    K = x_ref.shape[0] // bn

    # One tall MXU matmul; zero-padded W columns give 0 -> 0 after ReLU/max.
    h = jnp.dot(x_ref[...], w_ref[...], preferred_element_type=jnp.float32)
    h = h + b_ref[...]                # (1, Dp) broadcasts over (bn*K, Dp)
    h = jnp.maximum(h, 0.0)           # ReLU in f32

    # Neighbor-axis reduce via XLU sublane reduce (free VLIW slot next to MXU).
    o_ref[...] = jnp.max(h.reshape(bn, K, Dp), axis=1).astype(o_ref.dtype)


def neighbor_aggregator_max(neighbor_feature, weight, bias=None, *,
                            block_n=None, cast_to_bf16=True):
    """relu(x @ W + b).max(axis=1) as a Pallas TPU kernel.

    neighbor_feature: (N, K, D) float32
    weight:           (D, D)    float32
    bias:             (D,)      float32 or None (treated as zeros)
    returns:          (N, D)    same dtype as neighbor_feature

    cast_to_bf16=True (default) runs the matmul in bf16 with f32 accumulation
    (MXU-native on v5e/v6e/v7x, halves x's HBM bytes); numerics differ from the
    f32 PyTorch reference by ~1e-2 relative.  Pass cast_to_bf16=False for
    exact-f32 matching.
    """
    N, K, D = neighbor_feature.shape
    assert weight.shape == (D, D)
    if bias is None:
        bias = jnp.zeros((D,), dtype=jnp.float32)
    assert bias.shape == (D,)
    out_dtype = neighbor_feature.dtype

    # ---- pad ONLY the output-feature dim of W / bias / output to 128 --------
    Dp = _round_up(D, 128)
    w = weight
    b = bias.astype(jnp.float32)
    if Dp != D:
        w = jnp.pad(w, ((0, 0), (0, Dp - D)))
        b = jnp.pad(b, (0, Dp - D))
    b2 = b.reshape(1, Dp)

    # ---- collapse (N, K, D) -> (N*K, D): free metadata reshape ---------------
    x2 = neighbor_feature.reshape(N * K, D)

    if cast_to_bf16:
        x2 = x2.astype(jnp.bfloat16)
        w = w.astype(jnp.bfloat16)

    itemsize = jnp.dtype(x2.dtype).itemsize
    tile_target, vmem_limit = _per_gen_budget()

    # ---- choose node block -----------------------------------------------------
    node_bytes = K * D * itemsize
    if block_n is not None:
        bn = max(8, (block_n // 8) * 8)
    else:
        # streamed x tile ~= tile_target bytes
        bn = max(8, (tile_target // max(node_bytes, 1) // 8) * 8)
        # keep the f32 intermediate h = (bn*K, Dp) under ~8 MiB
        bn = min(bn, max(8, ((8 * 1024 * 1024) // (K * Dp * 4) // 8) * 8))
        # ensure >= ~4 grid steps when N allows (v7x dual-TC sharding + pipelining)
        bn = min(bn, max(8, (pl.cdiv(N, 4) // 8) * 8))

    grid = (pl.cdiv(N, bn),)  # ragged last block: OOB rows read garbage /
                              # OOB output rows are masked out on writeback.

    bytes_accessed = (x2.size * itemsize
                      + w.size * jnp.dtype(w.dtype).itemsize
                      + b2.size * 4
                      + N * Dp * jnp.dtype(out_dtype).itemsize)
    cost = pl.CostEstimate(flops=2 * N * K * D * Dp,
                           transcendentals=0,
                           bytes_accessed=int(bytes_accessed))

    out = pl.pallas_call(
        _aggregator_kernel,
        out_shape=jax.ShapeDtypeStruct((N, Dp), out_dtype),
        grid_spec=pltpu.PrefetchScalarGridSpec(
            num_scalar_prefetch=0,
            grid=grid,
            in_specs=[
                # x tile: block over nodes (collapsed rows), full (unpadded) D
                pl.BlockSpec((bn * K, D), lambda i: (i, 0)),
                # weight / bias: constant block index -> VMEM-resident, no re-DMA
                pl.BlockSpec((D, Dp), lambda i: (0, 0)),
                pl.BlockSpec((1, Dp), lambda i: (0, 0)),
            ],
            out_specs=pl.BlockSpec((bn, Dp), lambda i: (i, 0)),
        ),
        compiler_params=pltpu.CompilerParams(
            dimension_semantics=("parallel",),   # megacore / dual-TC sharding
            vmem_limit_bytes=vmem_limit,
        ),
        cost_estimate=cost,
    )(x2, w, b2)

    # Only the padded feature lanes need slicing; node rows were never padded.
    return out if Dp == D else out[:, :D]


def reference(neighbor_feature, weight, bias):
    h = jnp.einsum("nkd,de->nke", neighbor_feature, weight) + bias
    h = jnp.maximum(h, 0.0)
    return jnp.max(h, axis=1)


if __name__ == "__main__":
    # Shapes implied by the module: (num_nodes, num_neighbors, input_dim).
    # N deliberately not a multiple of the node block to exercise the ragged path.
    N, K, D = 20, 8, 32

    key = jax.random.PRNGKey(0)
    kx, kw = jax.random.split(key)

    neighbor_feature = jax.random.normal(kx, (N, K, D), dtype=jnp.float32)

    # kaiming_uniform_ equivalent: bound = sqrt(6 / fan_in), fan_in = input_dim.
    bound = math.sqrt(6.0 / D)
    weight = jax.random.uniform(kw, (D, D), dtype=jnp.float32,
                                minval=-bound, maxval=bound)
    bias = jnp.zeros((D,), dtype=jnp.float32)  # init.zeros_

    ref = reference(neighbor_feature, weight, bias)

    # Exact-f32 path (matches the PyTorch module within float tolerance).
    out_f32 = jax.block_until_ready(
        neighbor_aggregator_max(neighbor_feature, weight, bias,
                                cast_to_bf16=False))
    assert out_f32.shape == (N, D)
    assert jnp.allclose(out_f32, ref, atol=1e-5, rtol=1e-5), "f32 mismatch"

    # Default bf16-matmul path (f32 accumulation): looser tolerance.
    out_bf16 = jax.block_until_ready(
        neighbor_aggregator_max(neighbor_feature, weight, bias))
    assert out_bf16.shape == (N, D)
    assert jnp.allclose(out_bf16, ref, atol=5e-2, rtol=5e-2), "bf16 mismatch"

    # Explicit multi-step ragged grid (block_n=16 -> 2 steps, last block ragged).
    out_r = jax.block_until_ready(
        neighbor_aggregator_max(neighbor_feature, weight, bias,
                                block_n=16, cast_to_bf16=False))
    assert jnp.allclose(out_r, ref, atol=1e-5, rtol=1e-5), "ragged-grid mismatch"

    print("KERNEL_OK")
</pallas_src>

<mosaic_0001>
module attributes {stable_mosaic.version = 11 : i64} {
  func.func @_aggregator_kernel(%arg0: i32, %arg1: memref<64x32xf32, #tpu.memory_space<vmem>>, %arg2: memref<32x128xf32, #tpu.memory_space<vmem>>, %arg3: memref<1x128xf32, #tpu.memory_space<vmem>>, %arg4: memref<8x128xf32, #tpu.memory_space<vmem>>) attributes {dimension_semantics = [#tpu.dimension_semantics<parallel>], iteration_bounds = array<i64: 3>, scalar_prefetch = 0 : i64, scratch_operands = 0 : i64, tpu.core_type = #tpu.core_type<tc>, window_params = [{transform_indices = @transform_0, window_bounds = array<i64: 64, 32>}, {pipeline_mode = #tpu.pipeline_mode<synchronous>, transform_indices = @transform_1, window_bounds = array<i64: 32, 128>}, {pipeline_mode = #tpu.pipeline_mode<synchronous>, transform_indices = @transform_2, window_bounds = array<i64: 1, 128>}, {transform_indices = @transform_3, window_bounds = array<i64: 8, 128>}]} {
    %c0 = arith.constant 0 : index
    %c0_0 = arith.constant 0 : index
    %0 = vector.load %arg1[%c0, %c0_0] : memref<64x32xf32, #tpu.memory_space<vmem>>, vector<64x32xf32>
    %c0_1 = arith.constant 0 : index
    %c0_2 = arith.constant 0 : index
    %1 = vector.load %arg2[%c0_1, %c0_2] : memref<32x128xf32, #tpu.memory_space<vmem>>, vector<32x128xf32>
    %cst = arith.constant dense<0.000000e+00> : vector<64x128xf32>
    %2 = tpu.matmul %0, %1, %cst {dimension_numbers = #tpu.dot_dimension_numbers<[1], [0], [0], [1], [0, 0, 1, 1], [], []>} : vector<64x32xf32>, vector<32x128xf32>, vector<64x128xf32> -> vector<64x128xf32>
    %c0_3 = arith.constant 0 : index
    %c0_4 = arith.constant 0 : index
    %3 = vector.load %arg3[%c0_3, %c0_4] : memref<1x128xf32, #tpu.memory_space<vmem>>, vector<1x128xf32>
    %4 = vector.broadcast %3 : vector<1x128xf32> to vector<64x128xf32>
    %5 = arith.addf %2, %4 : vector<64x128xf32>
    %cst_5 = arith.constant 0.000000e+00 : f32
    %6 = vector.broadcast %cst_5 : f32 to vector<64x128xf32>
    %7 = arith.maximumf %5, %6 : vector<64x128xf32>
    %8 = vector.shape_cast %7 : vector<64x128xf32> to vector<8x8x128xf32>
    %cst_6 = arith.constant dense<0xFF800000> : vector<8x128xf32>
    %9 = vector.multi_reduction <maximumf>, %8, %cst_6 [1] : vector<8x8x128xf32> to vector<8x128xf32>
    %c0_7 = arith.constant 0 : index
    %c0_8 = arith.constant 0 : index
    %10 = vector.load %arg4[%c0_7, %c0_8] : memref<8x128xf32, #tpu.memory_space<vmem>>, vector<8x128xf32>
    tpu.vector_store %arg4[%c0_7, %c0_8], %9 {strides = array<i32>} : memref<8x128xf32, #tpu.memory_space<vmem>>, vector<8x128xf32>,
    return
  }
  func.func @transform_0(%arg0: i32) -> (i32, i32) {
    %c0_i32 = arith.constant 0 : i32
    %c0_i32_0 = arith.constant 0 : i32
    return %arg0, %c0_i32 : i32, i32
  }
  func.func @transform_1(%arg0: i32) -> (i32, i32) {
    %c0_i32 = arith.constant 0 : i32
    %c0_i32_0 = arith.constant 0 : i32
    %c0_i32_1 = arith.constant 0 : i32
    return %c0_i32, %c0_i32_0 : i32, i32
  }
  func.func @transform_2(%arg0: i32) -> (i32, i32) {
    %c0_i32 = arith.constant 0 : i32
    %c0_i32_0 = arith.constant 0 : i32
    %c0_i32_1 = arith.constant 0 : i32
    return %c0_i32, %c0_i32_0 : i32, i32
  }
  func.func @transform_3(%arg0: i32) -> (i32, i32) {
    %c0_i32 = arith.constant 0 : i32
    %c0_i32_0 = arith.constant 0 : i32
    return %arg0, %c0_i32 : i32, i32
  }
}

</mosaic_0001>

<llo_original>
// kernel: tpu_custom_call.1
$region0: #{tpu_custom_call.1}
  #allocation0 [shape = 'u32[]', space=smem, size = 0x4, offset = 0x4, fixed_abs, tag = 'smem constant byte address 0x4 - core index']
  #allocation1 [shape = 'u32[144,128]{1,0:T(1,128)}', space=vmem, size = 0x12000, scoped, tag = 'internal scratch']
  %s0 = inlined_call_operand.vmem [shape: f32[160,32], index: 0, kind: input, shape index: {}]
  %s1 = inlined_call_operand.vmem [shape: f32[32,128], index: 1, kind: input, shape index: {}]
  %s2 = inlined_call_operand.vmem [shape: f32[1,128], index: 2, kind: input, shape index: {}]
  %s3 = inlined_call_operand.hbm [shape: f32[20,128], index: 3, kind: output, shape index: {}]
  %s4 = sld [smem:[#allocation0]]
  $region45: #{tpu_custom_call.1} parent=0
    _
  %s6 = ssub.s32 1, %s4
  %s7 = scalar_select 0, %s6, %s4
  $region1: #{tpu_custom_call.1} parent=0
    #allocation2 [shape = 'u8[8192]{0}', space=vmem, size = 0x2000, scoped, tag = 'output window, operand 0']
    #allocation3 [shape = 's32[2]{0}', space=sflag, size = 0x8, scoped, tag = 'scoped memory for tpu_custom_call.1']
    %8 = vsyncpa [#allocation3], 0
    %s9 = scalar_lea.sflag [#allocation3], 1
    %10 = vsyncpa %s9, 0
    loop: start=0, step=1, limit=5
    $region2: #{tpu_custom_call.1} parent=1 // loop_pre_header
      _
    $region3: #{tpu_custom_call.1} parent=1 // loop_header
      %s12 = sphi 0, %s16
      %p13 = scmp.ge.s32.totalorder %s12, 5
      %s22 = sphi 0, %s24
      %s25 = sphi 0, %s22
      %s26 = sphi 0, %s25
      %s42 = sphi 0, %s26
      %s46 = sphi 0, %s46
      %s48 = sphi 0, %s46
      %s49 = sphi 0, %s48
      %s63 = sphi 0, %s49
      %s67 = sphi 0, %s67
      %s69 = sphi 0, %s67
      %s70 = sphi 0, %s69
      %s84 = sphi 0, %s70
      %s90 = sphi 0, %s92
      %s93 = sphi 0, %s90
      %s94 = sphi 0, %s93
      %s110 = sphi 0, %s94
    $region4: #{tpu_custom_call.1} parent=1 // loop_header_branch
      %15 = sbr.rel (%p13) target = $region8
    $region5: #{tpu_custom_call.1} parent=1 // loop_body
      %s17 = ssub.s32 %s12, 1
      %s18 = ssub.s32 %s12, 2
      %s19 = sadd.s32 %s12, 1
      %s20 = ssub.s32 %s12, %s19
      %p21 = scmp.eq.s32.totalorder %s20, 0
      %s23 = sadd.s32 %s22, 1
      %s24 = scalar_select %p21, %s22, %s23
      %p27 = pneg %p21
      %p28 = scmp.eq.s32.totalorder %s12, 2
      %p29 = por %p27, %p28
      %p30 = scmp.ne.s32.totalorder %s22, %s25
      %p31 = scmp.eq.s32.totalorder %s12, 0
      %p32 = por %p30, %p31
      %p33 = scmp.ne.s32.totalorder %s22, %s25
      %p34 = scmp.eq.s32.totalorder %s17, 2
      %p35 = por %p33, %p34
      %p36 = scmp.ne.s32.totalorder %s25, %s26
      %p37 = scmp.eq.s32.totalorder %s17, 0
      %p38 = por %p36, %p37
      %p39 = scmp.ne.s32.totalorder %s25, %s26
      %p40 = scmp.eq.s32.totalorder %s18, 2
      %p41 = por %p39, %p40
      %p43 = scmp.ne.s32.totalorder %s26, %s42
      %p44 = scmp.eq.s32.totalorder %s18, 0
      %p45 = por %p43, %p44
      %s47 = sadd.s32 %s46, 1
      %p50 = scmp.eq.s32.totalorder %s12, 2
      %p51 = scmp.ne.s32.totalorder %s46, %s48
      %p52 = scmp.eq.s32.totalorder %s12, 0
      %p53 = por %p51, %p52
      %p54 = scmp.ne.s32.totalorder %s46, %s48
      %p55 = scmp.eq.s32.totalorder %s17, 2
      %p56 = por %p54, %p55
      %p57 = scmp.ne.s32.totalorder %s48, %s49
      %p58 = scmp.eq.s32.totalorder %s17, 0
      %p59 = por %p57, %p58
      %p60 = scmp.ne.s32.totalorder %s48, %s49
      %p61 = scmp.eq.s32.totalorder %s18, 2
      %p62 = por %p60, %p61
      %p64 = scmp.ne.s32.totalorder %s49, %s63
      %p65 = scmp.eq.s32.totalorder %s18, 0
      %p66 = por %p64, %p65
      %s68 = sadd.s32 %s67, 1
      %p71 = scmp.eq.s32.totalorder %s12, 2
      %p72 = scmp.ne.s32.totalorder %s67, %s69
      %p73 = scmp.eq.s32.totalorder %s12, 0
      %p74 = por %p72, %p73
      %p75 = scmp.ne.s32.totalorder %s67, %s69
      %p76 = scmp.eq.s32.totalorder %s17, 2
      %p77 = por %p75, %p76
      %p78 = scmp.ne.s32.totalorder %s69, %s70
      %p79 = scmp.eq.s32.totalorder %s17, 0
      %p80 = por %p78, %p79
      %p81 = scmp.ne.s32.totalorder %s69, %s70
      %p82 = scmp.eq.s32.totalorder %s18, 2
      %p83 = por %p81, %p82
      %p85 = scmp.ne.s32.totalorder %s70, %s84
      %p86 = scmp.eq.s32.totalorder %s18, 0
      %p87 = por %p85, %p86
      %s88 = ssub.s32 %s12, %s19
      %p89 = scmp.eq.s32.totalorder %s88, 0
      %s91 = sadd.s32 %s90, 1
      %s92 = scalar_select %p89, %s90, %s91
      %p95 = pneg %p89
      %p96 = scmp.eq.s32.totalorder %s12, 2
      %p97 = por %p95, %p96
      %p98 = scmp.ne.s32.totalorder %s90, %s93
      %p99 = scmp.eq.s32.totalorder %s12, 0
      %p100 = por %p98, %p99
      %p101 = scmp.ne.s32.totalorder %s90, %s93
      %p102 = scmp.eq.s32.totalorder %s17, 2
      %p103 = por %p101, %p102
      %p104 = scmp.ne.s32.totalorder %s93, %s94
      %p105 = scmp.eq.s32.totalorder %s17, 0
      %p106 = por %p104, %p105
      %p107 = scmp.ne.s32.totalorder %s93, %s94
      %p108 = scmp.eq.s32.totalorder %s18, 2
      %p109 = por %p107, %p108
      %p111 = scmp.ne.s32.totalorder %s94, %s110
      %p112 = scmp.eq.s32.totalorder %s18, 0
      %p113 = por %p111, %p112
      %p114 = scmp.le.s32.totalorder 1, %s12
      %p115 = scmp.lt.s32.totalorder %s12, 4
      %p116 = pnand %p114, %p115
      %p117 = pneg %p116
      // Predicated region
      $region9: #{tpu_custom_call.1} parent=5 // pred_check
        _
      $region10: #{tpu_custom_call.1} parent=5 // pred_check_branch
        %119 = sbr.rel (%p116) target = $region12
      $region11: #{tpu_custom_call.1} parent=5 // pred_region
        %s120 = ssub.s32 %s12, 1
        // Predicated region
        $region13: #{tpu_custom_call.1} parent=11 // pred_check
          %p121 = pneg %p59
        $region14: #{tpu_custom_call.1} parent=11 // pred_check_branch
          %123 = sbr.rel (%p121) target = $region16
        $region15: #{tpu_custom_call.1} parent=11 // pred_region
          _
        $region16: #{tpu_custom_call.1} parent=11 // pred_fallthru
          _
        // Predicated region
        $region17: #{tpu_custom_call.1} parent=11 // pred_check
          %p124 = pneg %p80
        $region18: #{tpu_custom_call.1} parent=11 // pred_check_branch
          %126 = sbr.rel (%p124) target = $region20
        $region19: #{tpu_custom_call.1} parent=11 // pred_region
          _
        $region20: #{tpu_custom_call.1} parent=11 // pred_fallthru
          _
      $region12: #{tpu_custom_call.1} parent=5 // pred_fallthru
        _
      %p127 = scmp.lt.s32.totalorder %s12, 3
      // Predicated region
      $region21: #{tpu_custom_call.1} parent=5 // pred_check
        %p128 = pneg %p127
      $region22: #{tpu_custom_call.1} parent=5 // pred_check_branch
        %130 = sbr.rel (%p128) target = $region24
      $region23: #{tpu_custom_call.1} parent=5 // pred_region
        // Predicated region
        $region25: #{tpu_custom_call.1} parent=23 // pred_check
          %p131 = pneg %p32
        $region26: #{tpu_custom_call.1} parent=23 // pred_check_branch
          %133 = sbr.rel (%p131) target = $region28
        $region27: #{tpu_custom_call.1} parent=23 // pred_region
          %s134 = smul.u32 8, %s12
          %s135 = ssub.s32 20, %s134
          %p136 = scmp.lt.s32.totalorder %s135, 8
          %s137 = scalar_select %p136, %s135, 8
          %s138 = smul.u32 128, %s137
          %p139 = scmp.lt.s32.totalorder %s134, 19
          %s140 = scalar_select %p139, %s134, 19
          %s141 = smul.addr %s140, 8
          %s142 = scalar_lea.vmem %s0, %s141
          %s143 = smul.u32 8, %s12
          %s144 = ssub.s32 20, %s143
          %p145 = scmp.lt.s32.totalorder %s144, 8
          %s146 = scalar_select %p145, %s144, 8
          %s147 = smul.u32 128, %s146
        $region28: #{tpu_custom_call.1} parent=23 // pred_fallthru
          _
      $region24: #{tpu_custom_call.1} parent=5 // pred_fallthru
        _
      %p148 = scmp.le.s32.totalorder 1, %s12
      %p149 = scmp.lt.s32.totalorder %s12, 4
      %p150 = pnand %p148, %p149
      %p151 = pneg %p150
      // Predicated region
      $region29: #{tpu_custom_call.1} parent=5 // pred_check
        _
      $region30: #{tpu_custom_call.1} parent=5 // pred_check_branch
        %153 = sbr.rel (%p150) target = $region32
      $region31: #{tpu_custom_call.1} parent=5 // pred_region
        %s154 = ssub.s32 %s12, 1
        %s155 = smul.u32 8, %s17
        %s156 = ssub.s32 20, %s155
        %p157 = scmp.lt.s32.totalorder %s156, 8
        %s158 = scalar_select %p157, %s156, 8
        %s159 = smul.u32 128, %s158
        %p160 = scmp.lt.s32.totalorder %s155, 19
        %s161 = scalar_select %p160, %s155, 19
        %s162 = smul.addr %s161, 8
        %s163 = scalar_lea.vmem %s0, %s162
        %p164 = pneg %p38
        %p165 = pneg %p35
        %p166 = pneg %p59
        %p167 = pneg %p56
        %p168 = pneg %p80
        %p169 = pneg %p77
        %p170 = pneg %p106
        %p171 = pneg %p103
        %s172 = sand.u32 %s93, 1
        %s173 = scalar_lea.sflag [#allocation3], %s172
        %s174 = sand.u32 %s93, 1
        %s175 = smul.addr %s174, 8
        %s176 = scalar_lea.vmem [#allocation2], %s175
        %s177 = smul.u32 8, %s17
        %s178 = ssub.s32 20, %s177
        %p179 = scmp.lt.s32.totalorder %s178, 8
        %s180 = scalar_select %p179, %s178, 8
        %s181 = smul.u32 128, %s180
        %p182 = scmp.lt.s32.totalorder %s177, 19
        %s183 = scalar_select %p182, %s177, 19
        %s184 = smul.addr %s183, 8
        %s185 = scalar_lea.vmem %s0, %s184
        %s186 = smul.u32 8, %s17
        %s187 = ssub.s32 20, %s186
        %p188 = scmp.lt.s32.totalorder %s187, 8
        %s189 = scalar_select %p188, %s187, 8
        %s190 = smul.u32 128, %s189
        %v191 = vld [vmem:[%s185] sm:$0xff]
        %v192 = vld [vmem:[%s185 + $0x8] sm:$0xff]
        %v193 = vld [vmem:[%s185 + $0x10] sm:$0xff]
        %v194 = vld [vmem:[%s185 + $0x18] sm:$0xff]
        %v195 = vld [vmem:[%s185 + $0x20] sm:$0xff]
        %v196 = vld [vmem:[%s185 + $0x28] sm:$0xff]
        %v197 = vld [vmem:[%s185 + $0x30] sm:$0xff]
        %v198 = vld [vmem:[%s185 + $0x38] sm:$0xff]
        %v199 = vld [vmem:[%s1] sm:$0xff]
        %v200 = vld [vmem:[%s1 + $0x8] sm:$0xff]
        %v201 = vld [vmem:[%s1 + $0x10] sm:$0xff]
        %v202 = vld [vmem:[%s1 + $0x18] sm:$0xff]
        %v203 = vld [vmem:[%s2] sm:$0x1]
        %v205 = vlaneseq
        %v206 = vshrl.u32 %v205, 7
        %v207 = vsub.s32 0, %v206
        %v208 = vrot.slane %v203, %v207
        %vm210 = vcmask 261120
        %v212 = vsel %vm210, %v191, 0
        %v215 = vsel %vm210, %v192, 0
        %v218 = vsel %vm210, %v193, 0
        %v221 = vsel %vm210, %v194, 0
        %v224 = vsel %vm210, %v195, 0
        %v227 = vsel %vm210, %v196, 0
        %v230 = vsel %vm210, %v197, 0
        %v233 = vsel %vm210, %v198, 0
        %235 = vmatprep.subr.mxu0 0.0
        %236 = vmatpush1.msra.mxu0 %v199
        %237 = vmatprep.subr.mxu0 0.0
        %238 = vmatpush1.msra.mxu0 %v200
        %239 = vmatprep.subr.mxu0 0.0
        %240 = vmatpush1.msra.mxu0 %v201
        %241 = vmatprep.subr.mxu0 0.0
        %242 = vmatpush1.msra.mxu0 %v202
        %243 = vmatprep.subr.mxu0 0.0
        %244 = vmatpush1.msra.mxu0 0.0
        %245 = vmatprep.subr.mxu0 0.0
        %246 = vmatpush1.msra.mxu0 0.0
        %247 = vmatprep.subr.mxu0 0.0
        %248 = vmatpush1.msra.mxu0 0.0
        %249 = vmatprep.subr.mxu0 0.0
        %250 = vmatpush1.msra.mxu0 0.0
        %251 = vmatprep.subr.mxu0 0.0
        %252 = vmatpush1.msra.mxu0 0.0
        %253 = vmatprep.subr.mxu0 0.0
        %254 = vmatpush1.msra.mxu0 0.0
        %255 = vmatprep.subr.mxu0 0.0
        %256 = vmatpush1.msra.mxu0 0.0
        %257 = vmatprep.subr.mxu0 0.0
        %258 = vmatpush1.msra.mxu0 0.0
        %259 = vmatprep.subr.mxu0 0.0
        %260 = vmatpush1.msra.mxu0 0.0
        %261 = vmatprep.subr.mxu0 0.0
        %262 = vmatpush1.msra.mxu0 0.0
        %263 = vmatprep.subr.mxu0 0.0
        %264 = vmatpush1.msra.mxu0 0.0
        %265 = vmatprep.subr.mxu0 0.0
        %266 = vmatpush1.msra.mxu0 0.0
        %267 = vmatprep.subr.mxu0 0.0
        %268 = vmatpush1.msra.mxu0 0.0
        %269 = vmatprep.subr.mxu0 0.0
        %270 = vmatpush1.msra.mxu0 0.0
        %271 = vmatprep.subr.mxu0 0.0
        %272 = vmatpush1.msra.mxu0 0.0
        %273 = vmatprep.subr.mxu0 0.0
        %274 = vmatpush1.msra.mxu0 0.0
        %275 = vmatprep.subr.mxu0 0.0
        %276 = vmatpush1.msra.mxu0 0.0
        %277 = vmatprep.subr.mxu0 0.0
        %278 = vmatpush1.msra.mxu0 0.0
        %279 = vmatprep.subr.mxu0 0.0
        %280 = vmatpush1.msra.mxu0 0.0
        %281 = vmatprep.subr.mxu0 0.0
        %282 = vmatpush1.msra.mxu0 0.0
        %283 = vmatprep.subr.mxu0 0.0
        %284 = vmatpush1.msra.mxu0 0.0
        %285 = vmatprep.subr.mxu0 0.0
        %286 = vmatpush1.msra.mxu0 0.0
        %287 = vmatprep.subr.mxu0 0.0
        %288 = vmatpush1.msra.mxu0 0.0
        %289 = vmatprep.subr.mxu0 0.0
        %290 = vmatpush1.msra.mxu0 0.0
        %291 = vmatprep.subr.mxu0 0.0
        %292 = vmatpush1.msra.mxu0 0.0
        %293 = vmatprep.subr.mxu0 0.0
        %294 = vmatpush1.msra.mxu0 0.0
        %295 = vmatprep.subr.mxu0 0.0
        %296 = vmatpush1.msra.mxu0 0.0
        %297 = vmatprep.subr.mxu0 0.0
        %298 = vmatpush1.msra.mxu0 0.0
        %299 = vmatprep.mubr.f32.mxu0 0.0
        %300 = vmatmul.mubr.f32.gmra.mrb[0].mxu0 %v212
        %v301 = vpop.f32.mrb[0].mxu0
        %v302 = vadd.f32 %v208, %v301
        %v303 = vpop.f32.mrb[0].mxu0
        %304 = vmatprep.mubr.f32.mxu0 0.0
        %305 = vmatmul.mubr.f32.gmra.mrb[0].mxu0 %v215
        %v306 = vpop.f32.mrb[0].mxu0
        %v307 = vadd.f32 %v208, %v306
        %v308 = vpop.f32.mrb[0].mxu0
        %309 = vmatprep.mubr.f32.mxu0 0.0
        %310 = vmatmul.mubr.f32.gmra.mrb[0].mxu0 %v218
        %v311 = vpop.f32.mrb[0].mxu0
        %v312 = vadd.f32 %v208, %v311
        %v313 = vpop.f32.mrb[0].mxu0
        %314 = vmatprep.mubr.f32.mxu0 0.0
        %315 = vmatmul.mubr.f32.gmra.mrb[0].mxu0 %v221
        %v316 = vpop.f32.mrb[0].mxu0
        %v317 = vadd.f32 %v208, %v316
        %v318 = vpop.f32.mrb[0].mxu0
        %319 = vmatprep.mubr.f32.mxu0 0.0
        %320 = vmatmul.mubr.f32.gmra.mrb[0].mxu0 %v224
        %v321 = vpop.f32.mrb[0].mxu0
        %v322 = vadd.f32 %v208, %v321
        %v323 = vpop.f32.mrb[0].mxu0
        %324 = vmatprep.mubr.f32.mxu0 0.0
        %325 = vmatmul.mubr.f32.gmra.mrb[0].mxu0 %v227
        %v326 = vpop.f32.mrb[0].mxu0
        %v327 = vadd.f32 %v208, %v326
        %v328 = vpop.f32.mrb[0].mxu0
        %329 = vmatprep.mubr.f32.mxu0 0.0
        %330 = vmatmul.mubr.f32.gmra.mrb[0].mxu0 %v230
        %v331 = vpop.f32.mrb[0].mxu0
        %v332 = vadd.f32 %v208, %v331
        %v333 = vpop.f32.mrb[0].mxu0
        %334 = vmatprep.mubr.f32.mxu0 0.0
        %335 = vmatmul.mubr.f32.gmra.mrb[0].mxu0 %v233
        %v336 = vpop.f32.mrb[0].mxu0
        %v337 = vadd.f32 %v208, %v336
        %v338 = vpop.f32.mrb[0].mxu0
        %339 = vdwg.mxu0
        %v340 = vmax.f32 %v302, 0.0
        %v341 = vmax.f32 %v307, 0.0
        %v342 = vmax.f32 %v312, 0.0
        %v343 = vmax.f32 %v317, 0.0
        %v344 = vmax.f32 %v322, 0.0
        %v345 = vmax.f32 %v327, 0.0
        %v346 = vmax.f32 %v332, 0.0
        %v347 = vmax.f32 %v337, 0.0
        %v348 = vrot.slane %v340, 4
        %v349 = vmax.f32 %v340, %v348
        %v350 = vrot.slane %v349, 2
        %v351 = vmax.f32 %v349, %v350
        %v352 = vrot.slane %v351, 1
        %v353 = vmax.f32 %v351, %v352
        %v354 = vrot.slane %v341, 4
        %v355 = vmax.f32 %v341, %v354
        %v356 = vrot.slane %v355, 2
        %v357 = vmax.f32 %v355, %v356
        %v358 = vrot.slane %v357, 1
        %v359 = vmax.f32 %v357, %v358
        %v360 = vrot.slane %v342, 4
        %v361 = vmax.f32 %v342, %v360
        %v362 = vrot.slane %v361, 2
        %v363 = vmax.f32 %v361, %v362
        %v364 = vrot.slane %v363, 1
        %v365 = vmax.f32 %v363, %v364
        %v366 = vrot.slane %v343, 4
        %v367 = vmax.f32 %v343, %v366
        %v368 = vrot.slane %v367, 2
        %v369 = vmax.f32 %v367, %v368
        %v370 = vrot.slane %v369, 1
        %v371 = vmax.f32 %v369, %v370
        %v372 = vrot.slane %v344, 4
        %v373 = vmax.f32 %v344, %v372
        %v374 = vrot.slane %v373, 2
        %v375 = vmax.f32 %v373, %v374
        %v376 = vrot.slane %v375, 1
        %v377 = vmax.f32 %v375, %v376
        %v378 = vrot.slane %v345, 4
        %v379 = vmax.f32 %v345, %v378
        %v380 = vrot.slane %v379, 2
        %v381 = vmax.f32 %v379, %v380
        %v382 = vrot.slane %v381, 1
        %v383 = vmax.f32 %v381, %v382
        %v384 = vrot.slane %v346, 4
        %v385 = vmax.f32 %v346, %v384
        %v386 = vrot.slane %v385, 2
        %v387 = vmax.f32 %v385, %v386
        %v388 = vrot.slane %v387, 1
        %v389 = vmax.f32 %v387, %v388
        %v390 = vrot.slane %v347, 4
        %v391 = vmax.f32 %v347, %v390
        %v392 = vrot.slane %v391, 2
        %v393 = vmax.f32 %v391, %v392
        %v394 = vrot.slane %v393, 1
        %v395 = vmax.f32 %v393, %v394
        %vm404 = vcmask 1041409
        %v405 = vsel %vm404, %v359, %v353
        %vm406 = vcmask 1042434
        %v407 = vsel %vm406, %v365, %v405
        %vm408 = vcmask 1043459
        %v409 = vsel %vm408, %v371, %v407
        %vm410 = vcmask 1044484
        %v411 = vsel %vm410, %v377, %v409
        %vm412 = vcmask 1045509
        %v413 = vsel %vm412, %v383, %v411
        %vm414 = vcmask 1046534
        %v415 = vsel %vm414, %v389, %v413
        %vm416 = vcmask 1047559
        %v417 = vsel %vm416, %v395, %v415
        %419 = vst [vmem:[%s176] sm:$0xff] %v417
        %s420 = sand.u32 %s93, 1
        %s421 = scalar_lea.sflag [#allocation3], %s420
        %s422 = sand.u32 %s93, 1
        %s423 = smul.addr %s422, 8
        %s424 = scalar_lea.vmem [#allocation2], %s423
        // Predicated region
        $region33: #{tpu_custom_call.1} parent=31 // pred_check
          %p425 = pneg %p103
        $region34: #{tpu_custom_call.1} parent=31 // pred_check_branch
          %427 = sbr.rel (%p425) target = $region36
        $region35: #{tpu_custom_call.1} parent=31 // pred_region
          %s429 = ssub.s32 128, 128
          %430 = vsyncadd %s421, %s429
          %s431 = smul.addr %s17, 128
          %s432 = scalar_lea.hbm %s3, %s431
          %s434 = sshll.u32 %s424, 4
          %s435 = int_to_ptr.vmem [resolvable:$true] %s434
          %437 = dma.vmem_to_hbm [thread:$0]  %s435, 128, %s432, %s421
        $region36: #{tpu_custom_call.1} parent=31 // pred_fallthru
          _
      $region32: #{tpu_custom_call.1} parent=5 // pred_fallthru
        _
      %p438 = scmp.le.s32.totalorder 2, %s12
      // Predicated region
      $region37: #{tpu_custom_call.1} parent=5 // pred_check
        %p439 = pneg %p438
      $region38: #{tpu_custom_call.1} parent=5 // pred_check_branch
        %441 = sbr.rel (%p439) target = $region40
      $region39: #{tpu_custom_call.1} parent=5 // pred_region
        %s442 = ssub.s32 %s12, 2
        // Predicated region
        $region41: #{tpu_custom_call.1} parent=39 // pred_check
          %p443 = pneg %p109
        $region42: #{tpu_custom_call.1} parent=39 // pred_check_branch
          %445 = sbr.rel (%p443) target = $region44
        $region43: #{tpu_custom_call.1} parent=39 // pred_region
          %s446 = sand.u32 %s94, 1
          %s447 = scalar_lea.sflag [#allocation3], %s446
          %s448 = sand.u32 %s94, 1
          %s449 = smul.addr %s448, 8
          %s450 = scalar_lea.vmem [#allocation2], %s449
          %451 = dma.done %s447, 128
        $region44: #{tpu_custom_call.1} parent=39 // pred_fallthru
          _
      $region40: #{tpu_custom_call.1} parent=5 // pred_fallthru
        _
    $region6: #{tpu_custom_call.1} parent=1 // loop_footer
      %s16 = sadd.s32 1, %s12
    $region7: #{tpu_custom_call.1} parent=1 // loop_footer_branch
      %11 = sbr.rel target = $region3
    $region8: #{tpu_custom_call.1} parent=1 // loop_exit
      _
    %452 = vsyncpa [#allocation3], 1
    %s453 = scalar_lea.sflag [#allocation3], 1
    %454 = vsyncpa %s453, 1

</llo_original>
